<compile_context>
chip_gen: v6e
topology: v6e:2x2x1
jax: 0.10.0
libtpu: 0.0.40
codegen_flags: <defaults>
</compile_context>

<pallas_src>
import jax
import jax.numpy as jnp
from jax.experimental import pallas as pl
from jax.experimental.pallas import tpu as pltpu

_NEG = -1e30  # fill for padded vocab lanes: exp(_NEG - m) == 0 in f32


def _round_up(x, m):
    return ((x + m - 1) // m) * m


def _bigram_train_kernel(idx_ref, tgt_ref, emb_ref, logits_ref, loss_ref):
    """Embedding-row gather + vectorized mean cross-entropy.

    idx_ref    : (N,)    int32 SMEM (scalar prefetch)
    tgt_ref    : (N, 1)  int32 VMEM
    emb_ref    : (Vp, Vp) f32  VMEM
    logits_ref : (N, Vp)  f32  VMEM
    loss_ref   : (1, 1)   f32  VMEM
    """
    n, vp = logits_ref.shape

    # --- Embedding gather: N independent dynamic-row loads (exact lookup).
    # No cross-iteration dependence, so the scheduler can overlap the loads.
    # (For larger N, replace with a one-hot MXU matmul or batch 8 rows per
    #  store to get full (8, 128) vreg stores.)
    def gather(i, carry):
        logits_ref[pl.ds(i, 1), :] = emb_ref[pl.ds(idx_ref[i], 1), :]
        return carry

    jax.lax.fori_loop(0, n, gather, jnp.int32(0), unroll=True)

    # --- Cross-entropy, vectorized over all N rows at once (no per-row
    # (1, 128) ops, no serialized (1, 1) accumulator chain).
    logits = logits_ref[...]                                     # (N, Vp)
    lane = jax.lax.broadcasted_iota(jnp.int32, (n, vp), 1)       # hoisted iota
    m = jnp.max(logits, axis=-1, keepdims=True)                  # (N, 1)
    lse = m + jnp.log(jnp.sum(jnp.exp(logits - m), axis=-1, keepdims=True))
    # Target pick: correctness assumes 0 <= target < V (as nn.CrossEntropyLoss).
    t_logit = jnp.sum(
        jnp.where(lane == tgt_ref[...], logits, jnp.float32(0.0)),
        axis=-1, keepdims=True)                                  # (N, 1)
    per_row = lse - t_logit                                      # (N, 1)
    loss_ref[...] = jnp.sum(per_row, axis=0, keepdims=True) / jnp.float32(n)


def _bigram_logits_kernel(idx_ref, emb_ref, logits_ref):
    """Inference specialization: embedding gather only (no CE work)."""
    n = logits_ref.shape[0]

    def gather(i, carry):
        logits_ref[pl.ds(i, 1), :] = emb_ref[pl.ds(idx_ref[i], 1), :]
        return carry

    jax.lax.fori_loop(0, n, gather, jnp.int32(0), unroll=True)


def _pad_table(emb, vp):
    """Pad (V, V) table to (vp, vp); padded lanes get -1e30 so they drop out
    of logsumexp. Padded rows are never gathered (idx < V)."""
    v = emb.shape[0]
    table = jnp.full((vp, vp), _NEG, dtype=jnp.float32)
    return table.at[:v, :v].set(emb.astype(jnp.float32))


def bigram_forward(idx, emb, targets=None):
    """idx: (B, T) int32, emb: (V, V) float32, targets: optional (B, T) int32.

    Returns (logits, loss). Matching the PyTorch module: logits are (B, T, V)
    when targets is None, and (B*T, V) when targets are provided.
    """
    B, T = idx.shape
    V = emb.shape[0]
    N = B * T
    vp = _round_up(max(V, 128), 128)  # lane-dense vocab dim

    idx_flat = idx.reshape(N).astype(jnp.int32)
    emb_pad = _pad_table(emb, vp)

    if targets is None:
        logits_pad = pl.pallas_call(
            _bigram_logits_kernel,
            out_shape=jax.ShapeDtypeStruct((N, vp), jnp.float32),
            grid_spec=pltpu.PrefetchScalarGridSpec(
                num_scalar_prefetch=1,
                grid=(1,),
                in_specs=[pl.BlockSpec((vp, vp), lambda i, idx_s: (0, 0))],
                out_specs=pl.BlockSpec((N, vp), lambda i, idx_s: (0, 0)),
            ),
            compiler_params=pltpu.CompilerParams(
                dimension_semantics=("arbitrary",)),
        )(idx_flat, emb_pad)
        # NOTE: this slice is a non-lane-dense relayout; keep the padded
        # (.., 128)-lane logits if the consumer accepts them.
        logits = logits_pad[:, :V].reshape(B, T, V)
        return logits, None

    tgt_col = targets.reshape(N, 1).astype(jnp.int32)
    logits_pad, loss = pl.pallas_call(
        _bigram_train_kernel,
        out_shape=(
            jax.ShapeDtypeStruct((N, vp), jnp.float32),
            jax.ShapeDtypeStruct((1, 1), jnp.float32),
        ),
        grid_spec=pltpu.PrefetchScalarGridSpec(
            num_scalar_prefetch=1,
            grid=(1,),
            in_specs=[
                pl.BlockSpec((N, 1), lambda i, idx_s: (0, 0)),     # targets col
                pl.BlockSpec((vp, vp), lambda i, idx_s: (0, 0)),   # emb table
            ],
            out_specs=(
                pl.BlockSpec((N, vp), lambda i, idx_s: (0, 0)),
                pl.BlockSpec((1, 1), lambda i, idx_s: (0, 0)),
            ),
        ),
        compiler_params=pltpu.CompilerParams(
            dimension_semantics=("arbitrary",)),
    )(idx_flat, tgt_col, emb_pad)

    logits = logits_pad[:, :V].reshape(N, V)   # PyTorch train path: view(B*T, C)
    return logits, loss[0, 0]


if __name__ == "__main__":
    # Small shapes consistent with the module: batch=2, seq=8, vocab=65.
    B, T, V = 2, 8, 65
    key = jax.random.PRNGKey(0)
    k_emb, k_idx, k_tgt = jax.random.split(key, 3)

    # Deterministic parameter init (nn.Embedding default ~ N(0, 1)).
    emb = jax.random.normal(k_emb, (V, V), dtype=jnp.float32)
    idx = jax.random.randint(k_idx, (B, T), 0, V, dtype=jnp.int32)
    targets = jax.random.randint(k_tgt, (B, T), 0, V, dtype=jnp.int32)

    logits, loss = bigram_forward(idx, emb, targets)
    jax.block_until_ready((logits, loss))

    # Pure-JAX reference (mirrors PyTorch: train path logits are (B*T, V)).
    ref_logits = emb[idx].reshape(B * T, V)
    lse = jax.scipy.special.logsumexp(ref_logits, axis=-1)
    ref_loss = jnp.mean(
        lse - ref_logits[jnp.arange(B * T), targets.reshape(B * T)])

    assert logits.shape == (B * T, V)
    assert jnp.allclose(logits, ref_logits, atol=1e-5), "logits mismatch"
    assert jnp.allclose(loss, ref_loss, atol=1e-5), "loss mismatch"

    # Also exercise the specialized targets=None (logits-only) path.
    logits_only, loss_none = bigram_forward(idx, emb, None)
    jax.block_until_ready(logits_only)
    assert loss_none is None
    assert logits_only.shape == (B, T, V)
    assert jnp.allclose(logits_only, emb[idx], atol=1e-5), "inference logits mismatch"

    # TODO(synk): generate()'s torch.multinomial autoregressive sampling loop is
    # host-side control flow and is not part of the kernel forward pass.

    print("KERNEL_OK")
</pallas_src>

<mosaic_0001>
module attributes {stable_mosaic.version = 11 : i64} {
  func.func @_bigram_train_kernel(%arg0: i32, %arg1: memref<16xi32, #tpu.memory_space<smem>>, %arg2: memref<16x1xi32, #tpu.memory_space<vmem>>, %arg3: memref<128x128xf32, #tpu.memory_space<vmem>>, %arg4: memref<16x128xf32, #tpu.memory_space<vmem>>, %arg5: memref<1x1xf32, #tpu.memory_space<vmem>>) attributes {dimension_semantics = [#tpu.dimension_semantics<arbitrary>], iteration_bounds = array<i64: 1>, scalar_prefetch = 1 : i64, scratch_operands = 0 : i64, tpu.core_type = #tpu.core_type<tc>, window_params = [{pipeline_mode = #tpu.pipeline_mode<synchronous>, transform_indices = @transform_0, window_bounds = array<i64: 16, 1>}, {pipeline_mode = #tpu.pipeline_mode<synchronous>, transform_indices = @transform_1, window_bounds = array<i64: 128, 128>}, {pipeline_mode = #tpu.pipeline_mode<synchronous>, transform_indices = @transform_2, window_bounds = array<i64: 16, 128>}, {pipeline_mode = #tpu.pipeline_mode<synchronous>, transform_indices = @transform_3, window_bounds = array<i64: 1, 1>}]} {
    %c0_i32 = arith.constant 0 : i32
    %0 = arith.index_cast %c0_i32 : i32 to index
    %1 = memref.load %arg1[%0] : memref<16xi32, #tpu.memory_space<smem>>
    %2 = arith.index_cast %1 : i32 to index
    %c0 = arith.constant 0 : index
    %3 = vector.load %arg3[%2, %c0] : memref<128x128xf32, #tpu.memory_space<vmem>>, vector<1x128xf32>
    %4 = arith.index_cast %c0_i32 : i32 to index
    %c0_0 = arith.constant 0 : index
    %5 = vector.load %arg4[%4, %c0_0] : memref<16x128xf32, #tpu.memory_space<vmem>>, vector<1x128xf32>
    tpu.vector_store %arg4[%4, %c0_0], %3 {strides = array<i32>} : memref<16x128xf32, #tpu.memory_space<vmem>>, vector<1x128xf32>,
    %c1_i32 = arith.constant 1 : i32
    %6 = arith.index_cast %c1_i32 : i32 to index
    %7 = memref.load %arg1[%6] : memref<16xi32, #tpu.memory_space<smem>>
    %8 = arith.index_cast %7 : i32 to index
    %c0_1 = arith.constant 0 : index
    %9 = vector.load %arg3[%8, %c0_1] : memref<128x128xf32, #tpu.memory_space<vmem>>, vector<1x128xf32>
    %10 = arith.index_cast %c1_i32 : i32 to index
    %c0_2 = arith.constant 0 : index
    %11 = vector.load %arg4[%10, %c0_2] : memref<16x128xf32, #tpu.memory_space<vmem>>, vector<1x128xf32>
    tpu.vector_store %arg4[%10, %c0_2], %9 {strides = array<i32>} : memref<16x128xf32, #tpu.memory_space<vmem>>, vector<1x128xf32>,
    %c2_i32 = arith.constant 2 : i32
    %12 = arith.index_cast %c2_i32 : i32 to index
    %13 = memref.load %arg1[%12] : memref<16xi32, #tpu.memory_space<smem>>
    %14 = arith.index_cast %13 : i32 to index
    %c0_3 = arith.constant 0 : index
    %15 = vector.load %arg3[%14, %c0_3] : memref<128x128xf32, #tpu.memory_space<vmem>>, vector<1x128xf32>
    %16 = arith.index_cast %c2_i32 : i32 to index
    %c0_4 = arith.constant 0 : index
    %17 = vector.load %arg4[%16, %c0_4] : memref<16x128xf32, #tpu.memory_space<vmem>>, vector<1x128xf32>
    tpu.vector_store %arg4[%16, %c0_4], %15 {strides = array<i32>} : memref<16x128xf32, #tpu.memory_space<vmem>>, vector<1x128xf32>,
    %c3_i32 = arith.constant 3 : i32
    %18 = arith.index_cast %c3_i32 : i32 to index
    %19 = memref.load %arg1[%18] : memref<16xi32, #tpu.memory_space<smem>>
    %20 = arith.index_cast %19 : i32 to index
    %c0_5 = arith.constant 0 : index
    %21 = vector.load %arg3[%20, %c0_5] : memref<128x128xf32, #tpu.memory_space<vmem>>, vector<1x128xf32>
    %22 = arith.index_cast %c3_i32 : i32 to index
    %c0_6 = arith.constant 0 : index
    %23 = vector.load %arg4[%22, %c0_6] : memref<16x128xf32, #tpu.memory_space<vmem>>, vector<1x128xf32>
    tpu.vector_store %arg4[%22, %c0_6], %21 {strides = array<i32>} : memref<16x128xf32, #tpu.memory_space<vmem>>, vector<1x128xf32>,
    %c4_i32 = arith.constant 4 : i32
    %24 = arith.index_cast %c4_i32 : i32 to index
    %25 = memref.load %arg1[%24] : memref<16xi32, #tpu.memory_space<smem>>
    %26 = arith.index_cast %25 : i32 to index
    %c0_7 = arith.constant 0 : index
    %27 = vector.load %arg3[%26, %c0_7] : memref<128x128xf32, #tpu.memory_space<vmem>>, vector<1x128xf32>
    %28 = arith.index_cast %c4_i32 : i32 to index
    %c0_8 = arith.constant 0 : index
    %29 = vector.load %arg4[%28, %c0_8] : memref<16x128xf32, #tpu.memory_space<vmem>>, vector<1x128xf32>
    tpu.vector_store %arg4[%28, %c0_8], %27 {strides = array<i32>} : memref<16x128xf32, #tpu.memory_space<vmem>>, vector<1x128xf32>,
    %c5_i32 = arith.constant 5 : i32
    %30 = arith.index_cast %c5_i32 : i32 to index
    %31 = memref.load %arg1[%30] : memref<16xi32, #tpu.memory_space<smem>>
    %32 = arith.index_cast %31 : i32 to index
    %c0_9 = arith.constant 0 : index
    %33 = vector.load %arg3[%32, %c0_9] : memref<128x128xf32, #tpu.memory_space<vmem>>, vector<1x128xf32>
    %34 = arith.index_cast %c5_i32 : i32 to index
    %c0_10 = arith.constant 0 : index
    %35 = vector.load %arg4[%34, %c0_10] : memref<16x128xf32, #tpu.memory_space<vmem>>, vector<1x128xf32>
    tpu.vector_store %arg4[%34, %c0_10], %33 {strides = array<i32>} : memref<16x128xf32, #tpu.memory_space<vmem>>, vector<1x128xf32>,
    %c6_i32 = arith.constant 6 : i32
    %36 = arith.index_cast %c6_i32 : i32 to index
    %37 = memref.load %arg1[%36] : memref<16xi32, #tpu.memory_space<smem>>
    %38 = arith.index_cast %37 : i32 to index
    %c0_11 = arith.constant 0 : index
    %39 = vector.load %arg3[%38, %c0_11] : memref<128x128xf32, #tpu.memory_space<vmem>>, vector<1x128xf32>
    %40 = arith.index_cast %c6_i32 : i32 to index
    %c0_12 = arith.constant 0 : index
    %41 = vector.load %arg4[%40, %c0_12] : memref<16x128xf32, #tpu.memory_space<vmem>>, vector<1x128xf32>
    tpu.vector_store %arg4[%40, %c0_12], %39 {strides = array<i32>} : memref<16x128xf32, #tpu.memory_space<vmem>>, vector<1x128xf32>,
    %c7_i32 = arith.constant 7 : i32
    %42 = arith.index_cast %c7_i32 : i32 to index
    %43 = memref.load %arg1[%42] : memref<16xi32, #tpu.memory_space<smem>>
    %44 = arith.index_cast %43 : i32 to index
    %c0_13 = arith.constant 0 : index
    %45 = vector.load %arg3[%44, %c0_13] : memref<128x128xf32, #tpu.memory_space<vmem>>, vector<1x128xf32>
    %46 = arith.index_cast %c7_i32 : i32 to index
    %c0_14 = arith.constant 0 : index
    %47 = vector.load %arg4[%46, %c0_14] : memref<16x128xf32, #tpu.memory_space<vmem>>, vector<1x128xf32>
    tpu.vector_store %arg4[%46, %c0_14], %45 {strides = array<i32>} : memref<16x128xf32, #tpu.memory_space<vmem>>, vector<1x128xf32>,
    %c8_i32 = arith.constant 8 : i32
    %48 = arith.index_cast %c8_i32 : i32 to index
    %49 = memref.load %arg1[%48] : memref<16xi32, #tpu.memory_space<smem>>
    %50 = arith.index_cast %49 : i32 to index
    %c0_15 = arith.constant 0 : index
    %51 = vector.load %arg3[%50, %c0_15] : memref<128x128xf32, #tpu.memory_space<vmem>>, vector<1x128xf32>
    %52 = arith.index_cast %c8_i32 : i32 to index
    %c0_16 = arith.constant 0 : index
    %53 = vector.load %arg4[%52, %c0_16] : memref<16x128xf32, #tpu.memory_space<vmem>>, vector<1x128xf32>
    tpu.vector_store %arg4[%52, %c0_16], %51 {strides = array<i32>} : memref<16x128xf32, #tpu.memory_space<vmem>>, vector<1x128xf32>,
    %c9_i32 = arith.constant 9 : i32
    %54 = arith.index_cast %c9_i32 : i32 to index
    %55 = memref.load %arg1[%54] : memref<16xi32, #tpu.memory_space<smem>>
    %56 = arith.index_cast %55 : i32 to index
    %c0_17 = arith.constant 0 : index
    %57 = vector.load %arg3[%56, %c0_17] : memref<128x128xf32, #tpu.memory_space<vmem>>, vector<1x128xf32>
    %58 = arith.index_cast %c9_i32 : i32 to index
    %c0_18 = arith.constant 0 : index
    %59 = vector.load %arg4[%58, %c0_18] : memref<16x128xf32, #tpu.memory_space<vmem>>, vector<1x128xf32>
    tpu.vector_store %arg4[%58, %c0_18], %57 {strides = array<i32>} : memref<16x128xf32, #tpu.memory_space<vmem>>, vector<1x128xf32>,
    %c10_i32 = arith.constant 10 : i32
    %60 = arith.index_cast %c10_i32 : i32 to index
    %61 = memref.load %arg1[%60] : memref<16xi32, #tpu.memory_space<smem>>
    %62 = arith.index_cast %61 : i32 to index
    %c0_19 = arith.constant 0 : index
    %63 = vector.load %arg3[%62, %c0_19] : memref<128x128xf32, #tpu.memory_space<vmem>>, vector<1x128xf32>
    %64 = arith.index_cast %c10_i32 : i32 to index
    %c0_20 = arith.constant 0 : index
    %65 = vector.load %arg4[%64, %c0_20] : memref<16x128xf32, #tpu.memory_space<vmem>>, vector<1x128xf32>
    tpu.vector_store %arg4[%64, %c0_20], %63 {strides = array<i32>} : memref<16x128xf32, #tpu.memory_space<vmem>>, vector<1x128xf32>,
    %c11_i32 = arith.constant 11 : i32
    %66 = arith.index_cast %c11_i32 : i32 to index
    %67 = memref.load %arg1[%66] : memref<16xi32, #tpu.memory_space<smem>>
    %68 = arith.index_cast %67 : i32 to index
    %c0_21 = arith.constant 0 : index
    %69 = vector.load %arg3[%68, %c0_21] : memref<128x128xf32, #tpu.memory_space<vmem>>, vector<1x128xf32>
    %70 = arith.index_cast %c11_i32 : i32 to index
    %c0_22 = arith.constant 0 : index
    %71 = vector.load %arg4[%70, %c0_22] : memref<16x128xf32, #tpu.memory_space<vmem>>, vector<1x128xf32>
    tpu.vector_store %arg4[%70, %c0_22], %69 {strides = array<i32>} : memref<16x128xf32, #tpu.memory_space<vmem>>, vector<1x128xf32>,
    %c12_i32 = arith.constant 12 : i32
    %72 = arith.index_cast %c12_i32 : i32 to index
    %73 = memref.load %arg1[%72] : memref<16xi32, #tpu.memory_space<smem>>
    %74 = arith.index_cast %73 : i32 to index
    %c0_23 = arith.constant 0 : index
    %75 = vector.load %arg3[%74, %c0_23] : memref<128x128xf32, #tpu.memory_space<vmem>>, vector<1x128xf32>
    %76 = arith.index_cast %c12_i32 : i32 to index
    %c0_24 = arith.constant 0 : index
    %77 = vector.load %arg4[%76, %c0_24] : memref<16x128xf32, #tpu.memory_space<vmem>>, vector<1x128xf32>
    tpu.vector_store %arg4[%76, %c0_24], %75 {strides = array<i32>} : memref<16x128xf32, #tpu.memory_space<vmem>>, vector<1x128xf32>,
    %c13_i32 = arith.constant 13 : i32
    %78 = arith.index_cast %c13_i32 : i32 to index
    %79 = memref.load %arg1[%78] : memref<16xi32, #tpu.memory_space<smem>>
    %80 = arith.index_cast %79 : i32 to index
    %c0_25 = arith.constant 0 : index
    %81 = vector.load %arg3[%80, %c0_25] : memref<128x128xf32, #tpu.memory_space<vmem>>, vector<1x128xf32>
    %82 = arith.index_cast %c13_i32 : i32 to index
    %c0_26 = arith.constant 0 : index
    %83 = vector.load %arg4[%82, %c0_26] : memref<16x128xf32, #tpu.memory_space<vmem>>, vector<1x128xf32>
    tpu.vector_store %arg4[%82, %c0_26], %81 {strides = array<i32>} : memref<16x128xf32, #tpu.memory_space<vmem>>, vector<1x128xf32>,
    %c14_i32 = arith.constant 14 : i32
    %84 = arith.index_cast %c14_i32 : i32 to index
    %85 = memref.load %arg1[%84] : memref<16xi32, #tpu.memory_space<smem>>
    %86 = arith.index_cast %85 : i32 to index
    %c0_27 = arith.constant 0 : index
    %87 = vector.load %arg3[%86, %c0_27] : memref<128x128xf32, #tpu.memory_space<vmem>>, vector<1x128xf32>
    %88 = arith.index_cast %c14_i32 : i32 to index
    %c0_28 = arith.constant 0 : index
    %89 = vector.load %arg4[%88, %c0_28] : memref<16x128xf32, #tpu.memory_space<vmem>>, vector<1x128xf32>
    tpu.vector_store %arg4[%88, %c0_28], %87 {strides = array<i32>} : memref<16x128xf32, #tpu.memory_space<vmem>>, vector<1x128xf32>,
    %c15_i32 = arith.constant 15 : i32
    %90 = arith.index_cast %c15_i32 : i32 to index
    %91 = memref.load %arg1[%90] : memref<16xi32, #tpu.memory_space<smem>>
    %92 = arith.index_cast %91 : i32 to index
    %c0_29 = arith.constant 0 : index
    %93 = vector.load %arg3[%92, %c0_29] : memref<128x128xf32, #tpu.memory_space<vmem>>, vector<1x128xf32>
    %94 = arith.index_cast %c15_i32 : i32 to index
    %c0_30 = arith.constant 0 : index
    %95 = vector.load %arg4[%94, %c0_30] : memref<16x128xf32, #tpu.memory_space<vmem>>, vector<1x128xf32>
    tpu.vector_store %arg4[%94, %c0_30], %93 {strides = array<i32>} : memref<16x128xf32, #tpu.memory_space<vmem>>, vector<1x128xf32>,
    %c16_i32 = arith.constant 16 : i32
    %c0_31 = arith.constant 0 : index
    %c0_32 = arith.constant 0 : index
    %96 = vector.load %arg4[%c0_31, %c0_32] : memref<16x128xf32, #tpu.memory_space<vmem>>, vector<16x128xf32>
    %97 = tpu.iota {dimensions = array<i32: 1>} : vector<16x128xi32>
    %cst = arith.constant dense<0xFF800000> : vector<16xf32>
    %98 = vector.multi_reduction <maximumf>, %96, %cst [1] : vector<16x128xf32> to vector<16xf32>
    %99 = vector.shape_cast %98 : vector<16xf32> to vector<16x1xf32>
    %100 = vector.broadcast %99 : vector<16x1xf32> to vector<16x128xf32>
    %101 = arith.subf %96, %100 : vector<16x128xf32>
    %102 = math.exp %101 : vector<16x128xf32>
    %cst_33 = arith.constant dense<0.000000e+00> : vector<16xf32>
    %103 = vector.multi_reduction <add>, %102, %cst_33 [1] : vector<16x128xf32> to vector<16xf32>
    %104 = vector.shape_cast %103 : vector<16xf32> to vector<16x1xf32>
    %105 = math.log %104 : vector<16x1xf32>
    %106 = arith.addf %99, %105 : vector<16x1xf32>
    %c0_34 = arith.constant 0 : index
    %c0_35 = arith.constant 0 : index
    %107 = vector.load %arg2[%c0_34, %c0_35] : memref<16x1xi32, #tpu.memory_space<vmem>>, vector<16x1xi32>
    %108 = vector.broadcast %107 : vector<16x1xi32> to vector<16x128xi32>
    %109 = arith.cmpi eq, %97, %108 : vector<16x128xi32>
    %cst_36 = arith.constant 0.000000e+00 : f32
    %110 = vector.broadcast %cst_36 : f32 to vector<16x128xf32>
    %111 = arith.select %109, %96, %110 : vector<16x128xi1>, vector<16x128xf32>
    %cst_37 = arith.constant dense<0.000000e+00> : vector<16xf32>
    %112 = vector.multi_reduction <add>, %111, %cst_37 [1] : vector<16x128xf32> to vector<16xf32>
    %113 = vector.shape_cast %112 : vector<16xf32> to vector<16x1xf32>
    %114 = arith.subf %106, %113 : vector<16x1xf32>
    %cst_38 = arith.constant dense<0.000000e+00> : vector<1xf32>
    %115 = vector.multi_reduction <add>, %114, %cst_38 [0] : vector<16x1xf32> to vector<1xf32>
    %116 = vector.shape_cast %115 : vector<1xf32> to vector<1x1xf32>
    %cst_39 = arith.constant 1.600000e+01 : f32
    %117 = vector.broadcast %cst_39 : f32 to vector<1x1xf32>
    %118 = arith.divf %116, %117 : vector<1x1xf32>
    %c0_40 = arith.constant 0 : index
    %c0_41 = arith.constant 0 : index
    %119 = vector.load %arg5[%c0_40, %c0_41] : memref<1x1xf32, #tpu.memory_space<vmem>>, vector<1x1xf32>
    tpu.vector_store %arg5[%c0_40, %c0_41], %118 {strides = array<i32>} : memref<1x1xf32, #tpu.memory_space<vmem>>, vector<1x1xf32>,
    return
  }
  func.func @transform_0(%arg0: i32, %arg1: memref<16xi32, #tpu.memory_space<smem>>) -> (i32, i32) {
    %c0_i32 = arith.constant 0 : i32
    %c0_i32_0 = arith.constant 0 : i32
    %c0_i32_1 = arith.constant 0 : i32
    return %c0_i32, %c0_i32_0 : i32, i32
  }
  func.func @transform_1(%arg0: i32, %arg1: memref<16xi32, #tpu.memory_space<smem>>) -> (i32, i32) {
    %c0_i32 = arith.constant 0 : i32
    %c0_i32_0 = arith.constant 0 : i32
    %c0_i32_1 = arith.constant 0 : i32
    return %c0_i32, %c0_i32_0 : i32, i32
  }
  func.func @transform_2(%arg0: i32, %arg1: memref<16xi32, #tpu.memory_space<smem>>) -> (i32, i32) {
    %c0_i32 = arith.constant 0 : i32
    %c0_i32_0 = arith.constant 0 : i32
    %c0_i32_1 = arith.constant 0 : i32
    return %c0_i32, %c0_i32_0 : i32, i32
  }
  func.func @transform_3(%arg0: i32, %arg1: memref<16xi32, #tpu.memory_space<smem>>) -> (i32, i32) {
    %c0_i32 = arith.constant 0 : i32
    %c0_i32_0 = arith.constant 0 : i32
    %c0_i32_1 = arith.constant 0 : i32
    return %c0_i32, %c0_i32_0 : i32, i32
  }
}

</mosaic_0001>

<llo_original>
// kernel: tpu_custom_call.1
$region0: #{tpu_custom_call.1}
  #allocation0 [shape = 'u32[]', space=smem, size = 0x4, offset = 0x4, fixed_abs, tag = 'smem constant byte address 0x4 - core index']
  #allocation1 [shape = 'u32[144,128]{1,0:T(1,128)}', space=vmem, size = 0x12000, scoped, tag = 'internal scratch']
  #allocation2 [shape = 's32[1]{0}', space=sflag, size = 0x4, scoped, tag = 'scoped memory for tpu_custom_call.1']
  #allocation3 [shape = 'u8[512]{0}', space=smem, size = 0x200, scoped, tag = 'prefetched SMEM operand 0']
  %s0 = inlined_call_operand.vmem [shape: s32[16], index: 0, kind: input, shape index: {}]
  %s1 = inlined_call_operand.vmem [shape: s32[16,1], index: 1, kind: input, shape index: {}]
  %s2 = inlined_call_operand.hbm [shape: f32[128,128], index: 2, kind: input, shape index: {}]
  %s3 = inlined_call_operand.hbm [shape: f32[16,128], index: 3, kind: output, shape index: {0}]
  %s4 = inlined_call_operand.hbm [shape: f32[1,1], index: 4, kind: output, shape index: {1}]
  %5 = xla_tuple %s3, %s4
  %s6 = sld [smem:[#allocation0]]
  $region30: #{tpu_custom_call.1} parent=0
    _
  %s8 = ssub.s32 1, %s6
  %s9 = scalar_select 0, %s8, %s6
  %s10 = sshll.u32 %s0, 4
  %s11 = int_to_ptr.vmem [resolvable:$true] %s10
  %13 = dma.vmem_to_smem %s11, 16, [#allocation3], [#allocation2]
  %14 = dma.done [#allocation2], 16
  %15 = sfence
  $region1: #{tpu_custom_call.1} parent=0
    #allocation4 [shape = 'u8[65536]{0}', space=vmem, size = 0x10000, scoped, tag = 'input window, operand 2, single buffered']
    #allocation5 [shape = 's32[1]{0}', space=sflag, size = 0x4, scoped, tag = 'scoped memory for tpu_custom_call.1']
    #allocation6 [shape = 's32[1]{0}', space=sflag, size = 0x4, scoped, tag = 'scoped memory for tpu_custom_call.1']
    #allocation7 [shape = 'u8[8192]{0}', space=vmem, size = 0x2000, scoped, tag = 'output window, operand 0, single buffered']
    #allocation8 [shape = 'u8[512]{0}', space=vmem, size = 0x400, scoped, tag = 'output window, operand 1, single buffered']
    #allocation9 [shape = 's32[1]{0}', space=sflag, size = 0x4, scoped, tag = 'scoped memory for tpu_custom_call.1']
    %16 = vsyncpa [#allocation5], 0
    %17 = vsyncpa [#allocation6], 0
    %18 = vsyncpa [#allocation9], 0
    // Predicated region
    $region2: #{tpu_custom_call.1} parent=1 // pred_check
      _
    $region3: #{tpu_custom_call.1} parent=1 // pred_check_branch
      %20 = sbr.rel (0) target = $region5
    $region4: #{tpu_custom_call.1} parent=1 // pred_region
      _
    $region5: #{tpu_custom_call.1} parent=1 // pred_fallthru
      _
    // Predicated region
    $region6: #{tpu_custom_call.1} parent=1 // pred_check
      _
    $region7: #{tpu_custom_call.1} parent=1 // pred_check_branch
      %22 = sbr.rel (0) target = $region9
    $region8: #{tpu_custom_call.1} parent=1 // pred_region
      %s24 = ssub.s32 2048, 2048
      %25 = vsyncadd [#allocation5], %s24
      %s26 = sshll.u32 [#allocation4], 4
      %s27 = int_to_ptr.vmem [resolvable:$true] %s26
      %32 = dma.hbm_to_vmem [thread:$0]  %s2, 2048, %s27, [#allocation5], 128, 128, 8
    $region9: #{tpu_custom_call.1} parent=1 // pred_fallthru
      _
    // Predicated region
    $region10: #{tpu_custom_call.1} parent=1 // pred_check
      _
    $region11: #{tpu_custom_call.1} parent=1 // pred_check_branch
      %34 = sbr.rel (0) target = $region13
    $region12: #{tpu_custom_call.1} parent=1 // pred_region
      %35 = dma.done [#allocation5], 2048
    $region13: #{tpu_custom_call.1} parent=1 // pred_fallthru
      _
    %s36 = sld [smem:[#allocation3]]
    %s37 = scalar_lea.vmem [#allocation4], %s36
    %v38 = vld [vmem:[%s37] sm:$0x1]
    %39 = vst [vmem:[#allocation7] sm:$0x1] %v38
    %s40 = sld [smem:[#allocation3 + $0x1]]
    %s41 = scalar_lea.vmem [#allocation4], %s40
    %v42 = vld [vmem:[%s41] sm:$0x1]
    %43 = vst [vmem:[#allocation7 + $0x1] sm:$0x1] %v42
    %s44 = sld [smem:[#allocation3 + $0x2]]
    %s45 = scalar_lea.vmem [#allocation4], %s44
    %v46 = vld [vmem:[%s45] sm:$0x1]
    %47 = vst [vmem:[#allocation7 + $0x2] sm:$0x1] %v46
    %s48 = sld [smem:[#allocation3 + $0x3]]
    %s49 = scalar_lea.vmem [#allocation4], %s48
    %v50 = vld [vmem:[%s49] sm:$0x1]
    %51 = vst [vmem:[#allocation7 + $0x3] sm:$0x1] %v50
    %s52 = sld [smem:[#allocation3 + $0x4]]
    %s53 = scalar_lea.vmem [#allocation4], %s52
    %v54 = vld [vmem:[%s53] sm:$0x1]
    %55 = vst [vmem:[#allocation7 + $0x4] sm:$0x1] %v54
    %s56 = sld [smem:[#allocation3 + $0x5]]
    %s57 = scalar_lea.vmem [#allocation4], %s56
    %v58 = vld [vmem:[%s57] sm:$0x1]
    %59 = vst [vmem:[#allocation7 + $0x5] sm:$0x1] %v58
    %s60 = sld [smem:[#allocation3 + $0x6]]
    %s61 = scalar_lea.vmem [#allocation4], %s60
    %v62 = vld [vmem:[%s61] sm:$0x1]
    %63 = vst [vmem:[#allocation7 + $0x6] sm:$0x1] %v62
    %s64 = sld [smem:[#allocation3 + $0x7]]
    %s65 = scalar_lea.vmem [#allocation4], %s64
    %v66 = vld [vmem:[%s65] sm:$0x1]
    %67 = vst [vmem:[#allocation7 + $0x7] sm:$0x1] %v66
    %s68 = sld [smem:[#allocation3 + $0x8]]
    %s69 = scalar_lea.vmem [#allocation4], %s68
    %v70 = vld [vmem:[%s69] sm:$0x1]
    %71 = vst [vmem:[#allocation7 + $0x8] sm:$0x1] %v70
    %s72 = sld [smem:[#allocation3 + $0x9]]
    %s73 = scalar_lea.vmem [#allocation4], %s72
    %v74 = vld [vmem:[%s73] sm:$0x1]
    %75 = vst [vmem:[#allocation7 + $0x9] sm:$0x1] %v74
    %s76 = sld [smem:[#allocation3 + $0xa]]
    %s77 = scalar_lea.vmem [#allocation4], %s76
    %v78 = vld [vmem:[%s77] sm:$0x1]
    %79 = vst [vmem:[#allocation7 + $0xa] sm:$0x1] %v78
    %s80 = sld [smem:[#allocation3 + $0xb]]
    %s81 = scalar_lea.vmem [#allocation4], %s80
    %v82 = vld [vmem:[%s81] sm:$0x1]
    %83 = vst [vmem:[#allocation7 + $0xb] sm:$0x1] %v82
    %s84 = sld [smem:[#allocation3 + $0xc]]
    %s85 = scalar_lea.vmem [#allocation4], %s84
    %v86 = vld [vmem:[%s85] sm:$0x1]
    %87 = vst [vmem:[#allocation7 + $0xc] sm:$0x1] %v86
    %s88 = sld [smem:[#allocation3 + $0xd]]
    %s89 = scalar_lea.vmem [#allocation4], %s88
    %v90 = vld [vmem:[%s89] sm:$0x1]
    %91 = vst [vmem:[#allocation7 + $0xd] sm:$0x1] %v90
    %s92 = sld [smem:[#allocation3 + $0xe]]
    %s93 = scalar_lea.vmem [#allocation4], %s92
    %v94 = vld [vmem:[%s93] sm:$0x1]
    %95 = vst [vmem:[#allocation7 + $0xe] sm:$0x1] %v94
    %s96 = sld [smem:[#allocation3 + $0xf]]
    %s97 = scalar_lea.vmem [#allocation4], %s96
    %v98 = vld [vmem:[%s97] sm:$0x1]
    %99 = vst [vmem:[#allocation7 + $0xf] sm:$0x1] %v98
    %v100 = vld [vmem:[#allocation7] sm:$0xff]
    %v101 = vld [vmem:[#allocation7 + $0x8] sm:$0xff]
    %v102 = vlaneseq
    %v103 = vand.u32 %v102, 127
    %104 = vmax.xlane.f32.xlu0 %v100
    %v105 = vpop.xlane.xlu0 %104
    %106 = vmax.xlane.f32.xlu0 %v101
    %v107 = vpop.xlane.xlu0 %106
    %v108 = vsub.f32 %v100, %v105
    %v109 = vsub.f32 %v101, %v107
    %v110 = vmul.f32 %v108, 1.442695
    %v111 = vpow.pop %v110
    %v112 = vmul.f32 %v109, 1.442695
    %v113 = vpow.pop %v112
    %114 = vadd.xlane.f32.xlu0 %v111
    %v115 = vpop.xlane.xlu0 %114
    %116 = vadd.xlane.f32.xlu0 %v113
    %v117 = vpop.xlane.xlu0 %116
    %v118 = vlog2.pop %v115
    %v119 = vmul.f32 %v118, 0.6931472
    %v120 = vlog2.pop %v117
    %v121 = vmul.f32 %v120, 0.6931472
    %v122 = vadd.f32 %v105, %v119
    %v123 = vadd.f32 %v107, %v121
    %v124 = vld [vmem:[%s1] sm:$0xff]
    %v125 = vld [vmem:[%s1 + $0x8] sm:$0xff]
    %126 = vset.pattern.permute.xlu0 0
    %127 = vperm.xlu0 %126, %v124
    %v128 = vpop.permute.xlu0 %127
    %129 = vset.pattern.permute.xlu0 0
    %130 = vperm.xlu0 %129, %v125
    %v131 = vpop.permute.xlu0 %130
    %vm132 = vcmp.eq.s32.totalorder %v103, %v128
    %vm133 = vcmp.eq.s32.totalorder %v103, %v131
    %v134 = vsel %vm132, %v100, 0.0
    %v135 = vsel %vm133, %v101, 0.0
    %136 = vadd.xlane.f32.xlu0 %v134
    %v137 = vpop.xlane.xlu0 %136
    %138 = vadd.xlane.f32.xlu0 %v135
    %v139 = vpop.xlane.xlu0 %138
    %v140 = vsub.f32 %v122, %v137
    %v141 = vsub.f32 %v123, %v139
    %v142 = vadd.f32 %v140, %v141
    %v143 = vrot.slane %v142, 4
    %v144 = vadd.f32 %v142, %v143
    %v145 = vrot.slane %v144, 2
    %v146 = vadd.f32 %v144, %v145
    %v147 = vrot.slane %v146, 1
    %v148 = vadd.f32 %v146, %v147
    %v149 = vrcp.pop 16.0
    %v150 = vmul.f32 %v148, %v149
    %vm151 = vcmask 0
    %152 = vst.msk [vmem:[#allocation8] sm:$0x1] %vm151, %v150
    // Predicated region
    $region14: #{tpu_custom_call.1} parent=1 // pred_check
      _
    $region15: #{tpu_custom_call.1} parent=1 // pred_check_branch
      %154 = sbr.rel (0) target = $region17
    $region16: #{tpu_custom_call.1} parent=1 // pred_region
      %s156 = ssub.s32 256, 256
      %157 = vsyncadd [#allocation6], %s156
      %s158 = sshll.u32 [#allocation7], 4
      %s159 = int_to_ptr.vmem [resolvable:$true] %s158
      %164 = dma.vmem_to_hbm [thread:$0]  %s159, 256, %s3, [#allocation6], 128, 128, 8
    $region17: #{tpu_custom_call.1} parent=1 // pred_fallthru
      _
    // Predicated region
    $region18: #{tpu_custom_call.1} parent=1 // pred_check
      _
    $region19: #{tpu_custom_call.1} parent=1 // pred_check_branch
      %166 = sbr.rel (0) target = $region21
    $region20: #{tpu_custom_call.1} parent=1 // pred_region
      %s168 = ssub.s32 16, 16
      %169 = vsyncadd [#allocation9], %s168
      %s171 = sshll.u32 [#allocation8], 4
      %s172 = int_to_ptr.vmem [resolvable:$true] %s171
      %174 = dma.vmem_to_hbm [thread:$0]  %s172, 16, %s4, [#allocation9]
    $region21: #{tpu_custom_call.1} parent=1 // pred_fallthru
      _
    // Predicated region
    $region22: #{tpu_custom_call.1} parent=1 // pred_check
      _
    $region23: #{tpu_custom_call.1} parent=1 // pred_check_branch
      %176 = sbr.rel (0) target = $region25
    $region24: #{tpu_custom_call.1} parent=1 // pred_region
      %177 = dma.done [#allocation6], 256
    $region25: #{tpu_custom_call.1} parent=1 // pred_fallthru
      _
    // Predicated region
    $region26: #{tpu_custom_call.1} parent=1 // pred_check
      _
    $region27: #{tpu_custom_call.1} parent=1 // pred_check_branch
      %179 = sbr.rel (0) target = $region29
    $region28: #{tpu_custom_call.1} parent=1 // pred_region
      %180 = dma.done [#allocation9], 16
    $region29: #{tpu_custom_call.1} parent=1 // pred_fallthru
      _
    %181 = vsyncpa [#allocation5], 1
    %182 = vsyncpa [#allocation6], 1
    %183 = vsyncpa [#allocation9], 1

</llo_original>
